<compile_context>
chip_gen: v7x
topology: tpu7x:2x2x1
jax: 0.10.0
libtpu: 0.0.40
codegen_flags: <defaults>
</compile_context>

<pallas_src>
import functools
import math

import jax
import jax.numpy as jnp
from jax import lax
from jax.experimental import pallas as pl
from jax.experimental.pallas import tpu as pltpu


def mha_kernel(x_ref, wqkv_ref, wo_ref, o_ref, qkv_scr, attn_scr,
               *, n_heads, d_head):
    L, D = x_ref.shape
    TQ = o_ref.shape[0]
    qt = pl.program_id(1)

    # ---- fused (and pre-scaled) QKV projection, once per batch element ----
    @pl.when(qt == 0)
    def _project_qkv():
        x_bf = x_ref[...].astype(jnp.bfloat16)
        qkv = jnp.dot(x_bf, wqkv_ref[...],
                      preferred_element_type=jnp.float32)          # (L, 3D) f32
        qkv_scr[...] = qkv.astype(jnp.bfloat16)                    # scaledQ | K | V

    # ---- per-query-tile causal attention ----
    q0 = pl.multiple_of(qt * TQ, TQ)

    row = lax.broadcasted_iota(jnp.int32, (TQ, L), 0) + q0
    col = lax.broadcasted_iota(jnp.int32, (TQ, L), 1)
    bias = jnp.where(col <= row, jnp.float32(0.0), jnp.float32(-1e30))  # (TQ, L)

    for h in range(n_heads):                                        # small static H
        hsl = slice(h * d_head, (h + 1) * d_head)
        q_h = qkv_scr[pl.ds(q0, TQ), hsl]                           # (TQ, dh) bf16
        k_h = qkv_scr[:, D + h * d_head: D + (h + 1) * d_head]      # (L, dh)  bf16
        v_h = qkv_scr[:, 2 * D + h * d_head: 2 * D + (h + 1) * d_head]

        # Q @ K^T with the transpose folded into the contraction (no XLU transpose)
        s = lax.dot_general(q_h, k_h, (((1,), (1,)), ((), ())),
                            preferred_element_type=jnp.float32)     # (TQ, L) f32
        s = s + bias
        m = jnp.max(s, axis=-1, keepdims=True)
        p = jnp.exp(s - m)
        denom = jnp.sum(p, axis=-1, keepdims=True)

        o_h = jnp.dot(p.astype(jnp.bfloat16), v_h,
                      preferred_element_type=jnp.float32)           # (TQ, dh) f32
        inv = pl.reciprocal(denom, approx=True)                     # EUP, not VALU
        attn_scr[:, hsl] = (o_h * inv).astype(jnp.bfloat16)

    # ---- output projection (c_proj, bias=False) ----
    y = jnp.dot(attn_scr[...], wo_ref[...],
                preferred_element_type=jnp.float32)                 # (TQ, D) f32
    o_ref[...] = y.astype(o_ref.dtype)


def self_attention_multihead(x, wq, wk, wv, wo, *, n_heads, tq=None):
    """x: (B, L, D) f32. wq/wk/wv/wo: PyTorch nn.Linear weights, shape (out, in)."""
    B, L, D = x.shape
    assert D % n_heads == 0
    d_head = D // n_heads
    if tq is None:
        tq = L if L <= 256 else 256
    assert L % tq == 0, "sequence length must be divisible by the query tile"
    n_qt = L // tq
    scale = 1.0 / math.sqrt(d_head)

    # Pre-transpose to (in, out), fuse Q/K/V, fold the softmax scale into Wq,
    # cast to bf16 (MXU-native, half the DMA).
    wqkv = jnp.concatenate([wq.T * scale, wk.T, wv.T], axis=1).astype(jnp.bfloat16)
    wo_t = wo.T.astype(jnp.bfloat16)                                          # (D, D)

    kernel = functools.partial(mha_kernel, n_heads=n_heads, d_head=d_head)

    return pl.pallas_call(
        kernel,
        out_shape=jax.ShapeDtypeStruct((B, L, D), x.dtype),
        grid_spec=pltpu.PrefetchScalarGridSpec(
            num_scalar_prefetch=0,
            grid=(B, n_qt),
            in_specs=[
                pl.BlockSpec((None, L, D), lambda b, q: (b, 0, 0)),   # x (batch squeezed)
                pl.BlockSpec((D, 3 * D), lambda b, q: (0, 0)),        # fused scaled Wqkv^T
                pl.BlockSpec((D, D), lambda b, q: (0, 0)),            # Wo^T (bf16)
            ],
            out_specs=pl.BlockSpec((None, tq, D), lambda b, q: (b, q, 0)),
            scratch_shapes=[
                pltpu.VMEM((L, 3 * D), jnp.bfloat16),   # scaled-Q | K | V, persists over qt
                pltpu.VMEM((tq, D), jnp.bfloat16),      # per-tile head-concat slab
            ],
        ),
        compiler_params=pltpu.CompilerParams(
            dimension_semantics=("parallel", "arbitrary"),
            vmem_limit_bytes=32 * 1024 * 1024,
        ),
    )(x, wqkv, wo_t)


# ---------------- pure-JAX f32 reference (PyTorch forward, eval mode) ----------------
def reference(x, wq, wk, wv, wo, *, n_heads):
    B, L, D = x.shape
    dh = D // n_heads
    q = (x @ wq.T).reshape(B, L, n_heads, dh).transpose(0, 2, 1, 3)
    k = (x @ wk.T).reshape(B, L, n_heads, dh).transpose(0, 2, 1, 3)
    v = (x @ wv.T).reshape(B, L, n_heads, dh).transpose(0, 2, 1, 3)
    s = jnp.einsum("bhqd,bhkd->bhqk", q, k) / math.sqrt(dh)
    mask = jnp.tril(jnp.ones((L, L), dtype=bool))
    s = jnp.where(mask, s, -jnp.inf)
    p = jax.nn.softmax(s, axis=-1)
    a = jnp.einsum("bhqk,bhkd->bhqd", p, v).transpose(0, 2, 1, 3).reshape(B, L, D)
    return a @ wo.T


if __name__ == "__main__":
    B, L, D, H = 2, 8, 32, 4
    key = jax.random.PRNGKey(0)
    kx, kq, kk, kv, ko = jax.random.split(key, 5)
    wscale = 1.0 / math.sqrt(D)

    def mkw(k):  # PyTorch nn.Linear layout: (out_features, in_features)
        return (wscale * jax.random.normal(k, (D, D))).astype(jnp.float32)

    wq, wk, wv, wo = mkw(kq), mkw(kk), mkw(kv), mkw(ko)
    x = jax.random.normal(kx, (B, L, D), jnp.float32)

    out = self_attention_multihead(x, wq, wk, wv, wo, n_heads=H)
    out = jax.block_until_ready(out)

    ref = reference(x, wq, wk, wv, wo, n_heads=H)
    assert out.shape == (B, L, D)
    max_err = jnp.max(jnp.abs(out - ref))
    assert jnp.allclose(out, ref, atol=3e-2, rtol=3e-2), f"max err {max_err}"
    print("KERNEL_OK")
</pallas_src>

<mosaic_0001>
module attributes {stable_mosaic.version = 11 : i64} {
  func.func @mha_kernel(%arg0: i32, %arg1: i32, %arg2: memref<1x8x32xf32, #tpu.memory_space<vmem>>, %arg3: memref<32x96xbf16, #tpu.memory_space<vmem>>, %arg4: memref<32x32xbf16, #tpu.memory_space<vmem>>, %arg5: memref<1x8x32xf32, #tpu.memory_space<vmem>>, %arg6: memref<8x96xbf16, #tpu.memory_space<vmem>>, %arg7: memref<8x32xbf16, #tpu.memory_space<vmem>>) attributes {dimension_semantics = [#tpu.dimension_semantics<parallel>, #tpu.dimension_semantics<arbitrary>], iteration_bounds = array<i64: 2, 1>, scalar_prefetch = 0 : i64, scratch_operands = 2 : i64, tpu.core_type = #tpu.core_type<tc>, window_params = [{transform_indices = @transform_0, window_bounds = array<i64: 1, 8, 32>}, {pipeline_mode = #tpu.pipeline_mode<synchronous>, transform_indices = @transform_1, window_bounds = array<i64: 32, 96>}, {pipeline_mode = #tpu.pipeline_mode<synchronous>, transform_indices = @transform_2, window_bounds = array<i64: 32, 32>}, {transform_indices = @transform_3, window_bounds = array<i64: 1, 8, 32>}]} {
    %c0_i32 = arith.constant 0 : i32
    %0 = arith.cmpi eq, %arg1, %c0_i32 : i32
    %1 = arith.extui %0 : i1 to i32
    %c0_i32_0 = arith.constant 0 : i32
    %2 = arith.cmpi ne, %1, %c0_i32_0 : i32
    scf.if %2 {
      %c0_42 = arith.constant 0 : index
      %c0_43 = arith.constant 0 : index
      %c0_44 = arith.constant 0 : index
      %99 = vector.load %arg2[%c0_42, %c0_43, %c0_44] : memref<1x8x32xf32, #tpu.memory_space<vmem>>, vector<1x8x32xf32>
      %100 = vector.shape_cast %99 : vector<1x8x32xf32> to vector<8x32xf32>
      %101 = arith.truncf %100 : vector<8x32xf32> to vector<8x32xbf16>
      %c0_45 = arith.constant 0 : index
      %c0_46 = arith.constant 0 : index
      %102 = vector.load %arg3[%c0_45, %c0_46] : memref<32x96xbf16, #tpu.memory_space<vmem>>, vector<32x96xbf16>
      %cst_47 = arith.constant dense<0.000000e+00> : vector<8x96xf32>
      %103 = tpu.matmul %101, %102, %cst_47 {dimension_numbers = #tpu.dot_dimension_numbers<[1], [0], [0], [1], [0, 0, 1, 1], [], []>} : vector<8x32xbf16>, vector<32x96xbf16>, vector<8x96xf32> -> vector<8x96xf32>
      %104 = arith.truncf %103 : vector<8x96xf32> to vector<8x96xbf16>
      %c0_48 = arith.constant 0 : index
      %c0_49 = arith.constant 0 : index
      %105 = vector.load %arg6[%c0_48, %c0_49] : memref<8x96xbf16, #tpu.memory_space<vmem>>, vector<8x96xbf16>
      tpu.vector_store %arg6[%c0_48, %c0_49], %104 {strides = array<i32>} : memref<8x96xbf16, #tpu.memory_space<vmem>>, vector<8x96xbf16>,
    } else {
    }
    %c8_i32 = arith.constant 8 : i32
    %3 = arith.muli %arg1, %c8_i32 : i32
    %4 = tpu.assume_multiple %3, 8 : i32
    %5 = tpu.iota {dimensions = array<i32: 0>} : vector<8x8xi32>
    %6 = vector.broadcast %4 : i32 to vector<8x8xi32>
    %7 = arith.addi %5, %6 : vector<8x8xi32>
    %8 = tpu.iota {dimensions = array<i32: 1>} : vector<8x8xi32>
    %9 = arith.cmpi sle, %8, %7 : vector<8x8xi32>
    %cst = arith.constant 0.000000e+00 : f32
    %cst_1 = arith.constant -1.000000e+30 : f32
    %10 = vector.broadcast %cst : f32 to vector<8x8xf32>
    %11 = vector.broadcast %cst_1 : f32 to vector<8x8xf32>
    %12 = arith.select %9, %10, %11 : vector<8x8xi1>, vector<8x8xf32>
    %13 = arith.index_cast %4 : i32 to index
    %c0 = arith.constant 0 : index
    %14 = vector.load %arg6[%13, %c0] : memref<8x96xbf16, #tpu.memory_space<vmem>>, vector<8x8xbf16>
    %c0_2 = arith.constant 0 : index
    %c32 = arith.constant 32 : index
    %15 = vector.load %arg6[%c0_2, %c32] : memref<8x96xbf16, #tpu.memory_space<vmem>>, vector<8x8xbf16>
    %c0_3 = arith.constant 0 : index
    %c64 = arith.constant 64 : index
    %16 = vector.load %arg6[%c0_3, %c64] : memref<8x96xbf16, #tpu.memory_space<vmem>>, vector<8x8xbf16>
    %cst_4 = arith.constant dense<0.000000e+00> : vector<8x8xf32>
    %17 = tpu.matmul %14, %15, %cst_4 {dimension_numbers = #tpu.dot_dimension_numbers<[1], [1], [0], [0], [0, 0, 1, 0], [], []>} : vector<8x8xbf16>, vector<8x8xbf16>, vector<8x8xf32> -> vector<8x8xf32>
    %18 = arith.addf %17, %12 : vector<8x8xf32>
    %cst_5 = arith.constant dense<0xFF800000> : vector<8xf32>
    %19 = vector.multi_reduction <maximumf>, %18, %cst_5 [1] : vector<8x8xf32> to vector<8xf32>
    %20 = vector.shape_cast %19 : vector<8xf32> to vector<8x1xf32>
    %21 = vector.broadcast %20 : vector<8x1xf32> to vector<8x8xf32>
    %22 = arith.subf %18, %21 : vector<8x8xf32>
    %23 = math.exp %22 : vector<8x8xf32>
    %cst_6 = arith.constant dense<0.000000e+00> : vector<8xf32>
    %24 = vector.multi_reduction <add>, %23, %cst_6 [1] : vector<8x8xf32> to vector<8xf32>
    %25 = vector.shape_cast %24 : vector<8xf32> to vector<8x1xf32>
    %26 = arith.truncf %23 : vector<8x8xf32> to vector<8x8xbf16>
    %cst_7 = arith.constant dense<0.000000e+00> : vector<8x8xf32>
    %27 = tpu.matmul %26, %16, %cst_7 {dimension_numbers = #tpu.dot_dimension_numbers<[1], [0], [0], [1], [0, 0, 1, 1], [], []>} : vector<8x8xbf16>, vector<8x8xbf16>, vector<8x8xf32> -> vector<8x8xf32>
    %28 = tpu.reciprocal %25 {approx = true} : vector<8x1xf32> -> vector<8x1xf32>
    %29 = vector.broadcast %28 : vector<8x1xf32> to vector<8x8xf32>
    %30 = arith.mulf %27, %29 : vector<8x8xf32>
    %31 = arith.truncf %30 : vector<8x8xf32> to vector<8x8xbf16>
    %c0_8 = arith.constant 0 : index
    %c0_9 = arith.constant 0 : index
    %32 = vector.load %arg7[%c0_8, %c0_9] : memref<8x32xbf16, #tpu.memory_space<vmem>>, vector<8x8xbf16>
    tpu.vector_store %arg7[%c0_8, %c0_9], %31 {strides = array<i32>} : memref<8x32xbf16, #tpu.memory_space<vmem>>, vector<8x8xbf16>,
    %33 = arith.index_cast %4 : i32 to index
    %c8 = arith.constant 8 : index
    %34 = vector.load %arg6[%33, %c8] : memref<8x96xbf16, #tpu.memory_space<vmem>>, vector<8x8xbf16>
    %c0_10 = arith.constant 0 : index
    %c40 = arith.constant 40 : index
    %35 = vector.load %arg6[%c0_10, %c40] : memref<8x96xbf16, #tpu.memory_space<vmem>>, vector<8x8xbf16>
    %c0_11 = arith.constant 0 : index
    %c72 = arith.constant 72 : index
    %36 = vector.load %arg6[%c0_11, %c72] : memref<8x96xbf16, #tpu.memory_space<vmem>>, vector<8x8xbf16>
    %cst_12 = arith.constant dense<0.000000e+00> : vector<8x8xf32>
    %37 = tpu.matmul %34, %35, %cst_12 {dimension_numbers = #tpu.dot_dimension_numbers<[1], [1], [0], [0], [0, 0, 1, 0], [], []>} : vector<8x8xbf16>, vector<8x8xbf16>, vector<8x8xf32> -> vector<8x8xf32>
    %38 = arith.addf %37, %12 : vector<8x8xf32>
    %cst_13 = arith.constant dense<0xFF800000> : vector<8xf32>
    %39 = vector.multi_reduction <maximumf>, %38, %cst_13 [1] : vector<8x8xf32> to vector<8xf32>
    %40 = vector.shape_cast %39 : vector<8xf32> to vector<8x1xf32>
    %41 = vector.broadcast %40 : vector<8x1xf32> to vector<8x8xf32>
    %42 = arith.subf %38, %41 : vector<8x8xf32>
    %43 = math.exp %42 : vector<8x8xf32>
    %cst_14 = arith.constant dense<0.000000e+00> : vector<8xf32>
    %44 = vector.multi_reduction <add>, %43, %cst_14 [1] : vector<8x8xf32> to vector<8xf32>
    %45 = vector.shape_cast %44 : vector<8xf32> to vector<8x1xf32>
    %46 = arith.truncf %43 : vector<8x8xf32> to vector<8x8xbf16>
    %cst_15 = arith.constant dense<0.000000e+00> : vector<8x8xf32>
    %47 = tpu.matmul %46, %36, %cst_15 {dimension_numbers = #tpu.dot_dimension_numbers<[1], [0], [0], [1], [0, 0, 1, 1], [], []>} : vector<8x8xbf16>, vector<8x8xbf16>, vector<8x8xf32> -> vector<8x8xf32>
    %48 = tpu.reciprocal %45 {approx = true} : vector<8x1xf32> -> vector<8x1xf32>
    %49 = vector.broadcast %48 : vector<8x1xf32> to vector<8x8xf32>
    %50 = arith.mulf %47, %49 : vector<8x8xf32>
    %51 = arith.truncf %50 : vector<8x8xf32> to vector<8x8xbf16>
    %c0_16 = arith.constant 0 : index
    %c8_17 = arith.constant 8 : index
    %52 = vector.load %arg7[%c0_16, %c8_17] : memref<8x32xbf16, #tpu.memory_space<vmem>>, vector<8x8xbf16>
    tpu.vector_store %arg7[%c0_16, %c8_17], %51 {strides = array<i32>} : memref<8x32xbf16, #tpu.memory_space<vmem>>, vector<8x8xbf16>,
    %53 = arith.index_cast %4 : i32 to index
    %c16 = arith.constant 16 : index
    %54 = vector.load %arg6[%53, %c16] : memref<8x96xbf16, #tpu.memory_space<vmem>>, vector<8x8xbf16>
    %c0_18 = arith.constant 0 : index
    %c48 = arith.constant 48 : index
    %55 = vector.load %arg6[%c0_18, %c48] : memref<8x96xbf16, #tpu.memory_space<vmem>>, vector<8x8xbf16>
    %c0_19 = arith.constant 0 : index
    %c80 = arith.constant 80 : index
    %56 = vector.load %arg6[%c0_19, %c80] : memref<8x96xbf16, #tpu.memory_space<vmem>>, vector<8x8xbf16>
    %cst_20 = arith.constant dense<0.000000e+00> : vector<8x8xf32>
    %57 = tpu.matmul %54, %55, %cst_20 {dimension_numbers = #tpu.dot_dimension_numbers<[1], [1], [0], [0], [0, 0, 1, 0], [], []>} : vector<8x8xbf16>, vector<8x8xbf16>, vector<8x8xf32> -> vector<8x8xf32>
    %58 = arith.addf %57, %12 : vector<8x8xf32>
    %cst_21 = arith.constant dense<0xFF800000> : vector<8xf32>
    %59 = vector.multi_reduction <maximumf>, %58, %cst_21 [1] : vector<8x8xf32> to vector<8xf32>
    %60 = vector.shape_cast %59 : vector<8xf32> to vector<8x1xf32>
    %61 = vector.broadcast %60 : vector<8x1xf32> to vector<8x8xf32>
    %62 = arith.subf %58, %61 : vector<8x8xf32>
    %63 = math.exp %62 : vector<8x8xf32>
    %cst_22 = arith.constant dense<0.000000e+00> : vector<8xf32>
    %64 = vector.multi_reduction <add>, %63, %cst_22 [1] : vector<8x8xf32> to vector<8xf32>
    %65 = vector.shape_cast %64 : vector<8xf32> to vector<8x1xf32>
    %66 = arith.truncf %63 : vector<8x8xf32> to vector<8x8xbf16>
    %cst_23 = arith.constant dense<0.000000e+00> : vector<8x8xf32>
    %67 = tpu.matmul %66, %56, %cst_23 {dimension_numbers = #tpu.dot_dimension_numbers<[1], [0], [0], [1], [0, 0, 1, 1], [], []>} : vector<8x8xbf16>, vector<8x8xbf16>, vector<8x8xf32> -> vector<8x8xf32>
    %68 = tpu.reciprocal %65 {approx = true} : vector<8x1xf32> -> vector<8x1xf32>
    %69 = vector.broadcast %68 : vector<8x1xf32> to vector<8x8xf32>
    %70 = arith.mulf %67, %69 : vector<8x8xf32>
    %71 = arith.truncf %70 : vector<8x8xf32> to vector<8x8xbf16>
    %c0_24 = arith.constant 0 : index
    %c16_25 = arith.constant 16 : index
    %72 = vector.load %arg7[%c0_24, %c16_25] : memref<8x32xbf16, #tpu.memory_space<vmem>>, vector<8x8xbf16>
    tpu.vector_store %arg7[%c0_24, %c16_25], %71 {strides = array<i32>} : memref<8x32xbf16, #tpu.memory_space<vmem>>, vector<8x8xbf16>,
    %73 = arith.index_cast %4 : i32 to index
    %c24 = arith.constant 24 : index
    %74 = vector.load %arg6[%73, %c24] : memref<8x96xbf16, #tpu.memory_space<vmem>>, vector<8x8xbf16>
    %c0_26 = arith.constant 0 : index
    %c56 = arith.constant 56 : index
    %75 = vector.load %arg6[%c0_26, %c56] : memref<8x96xbf16, #tpu.memory_space<vmem>>, vector<8x8xbf16>
    %c0_27 = arith.constant 0 : index
    %c88 = arith.constant 88 : index
    %76 = vector.load %arg6[%c0_27, %c88] : memref<8x96xbf16, #tpu.memory_space<vmem>>, vector<8x8xbf16>
    %cst_28 = arith.constant dense<0.000000e+00> : vector<8x8xf32>
    %77 = tpu.matmul %74, %75, %cst_28 {dimension_numbers = #tpu.dot_dimension_numbers<[1], [1], [0], [0], [0, 0, 1, 0], [], []>} : vector<8x8xbf16>, vector<8x8xbf16>, vector<8x8xf32> -> vector<8x8xf32>
    %78 = arith.addf %77, %12 : vector<8x8xf32>
    %cst_29 = arith.constant dense<0xFF800000> : vector<8xf32>
    %79 = vector.multi_reduction <maximumf>, %78, %cst_29 [1] : vector<8x8xf32> to vector<8xf32>
    %80 = vector.shape_cast %79 : vector<8xf32> to vector<8x1xf32>
    %81 = vector.broadcast %80 : vector<8x1xf32> to vector<8x8xf32>
    %82 = arith.subf %78, %81 : vector<8x8xf32>
    %83 = math.exp %82 : vector<8x8xf32>
    %cst_30 = arith.constant dense<0.000000e+00> : vector<8xf32>
    %84 = vector.multi_reduction <add>, %83, %cst_30 [1] : vector<8x8xf32> to vector<8xf32>
    %85 = vector.shape_cast %84 : vector<8xf32> to vector<8x1xf32>
    %86 = arith.truncf %83 : vector<8x8xf32> to vector<8x8xbf16>
    %cst_31 = arith.constant dense<0.000000e+00> : vector<8x8xf32>
    %87 = tpu.matmul %86, %76, %cst_31 {dimension_numbers = #tpu.dot_dimension_numbers<[1], [0], [0], [1], [0, 0, 1, 1], [], []>} : vector<8x8xbf16>, vector<8x8xbf16>, vector<8x8xf32> -> vector<8x8xf32>
    %88 = tpu.reciprocal %85 {approx = true} : vector<8x1xf32> -> vector<8x1xf32>
    %89 = vector.broadcast %88 : vector<8x1xf32> to vector<8x8xf32>
    %90 = arith.mulf %87, %89 : vector<8x8xf32>
    %91 = arith.truncf %90 : vector<8x8xf32> to vector<8x8xbf16>
    %c0_32 = arith.constant 0 : index
    %c24_33 = arith.constant 24 : index
    %92 = vector.load %arg7[%c0_32, %c24_33] : memref<8x32xbf16, #tpu.memory_space<vmem>>, vector<8x8xbf16>
    tpu.vector_store %arg7[%c0_32, %c24_33], %91 {strides = array<i32>} : memref<8x32xbf16, #tpu.memory_space<vmem>>, vector<8x8xbf16>,
    %c0_34 = arith.constant 0 : index
    %c0_35 = arith.constant 0 : index
    %93 = vector.load %arg7[%c0_34, %c0_35] : memref<8x32xbf16, #tpu.memory_space<vmem>>, vector<8x32xbf16>
    %c0_36 = arith.constant 0 : index
    %c0_37 = arith.constant 0 : index
    %94 = vector.load %arg4[%c0_36, %c0_37] : memref<32x32xbf16, #tpu.memory_space<vmem>>, vector<32x32xbf16>
    %cst_38 = arith.constant dense<0.000000e+00> : vector<8x32xf32>
    %95 = tpu.matmul %93, %94, %cst_38 {dimension_numbers = #tpu.dot_dimension_numbers<[1], [0], [0], [1], [0, 0, 1, 1], [], []>} : vector<8x32xbf16>, vector<32x32xbf16>, vector<8x32xf32> -> vector<8x32xf32>
    %c0_39 = arith.constant 0 : index
    %c0_40 = arith.constant 0 : index
    %c0_41 = arith.constant 0 : index
    %96 = vector.load %arg5[%c0_39, %c0_40, %c0_41] : memref<1x8x32xf32, #tpu.memory_space<vmem>>, vector<1x8x32xf32>
    %97 = vector.shape_cast %96 : vector<1x8x32xf32> to vector<8x32xf32>
    %98 = vector.shape_cast %95 : vector<8x32xf32> to vector<1x8x32xf32>
    tpu.vector_store %arg5[%c0_39, %c0_40, %c0_41], %98 {strides = array<i32>} : memref<1x8x32xf32, #tpu.memory_space<vmem>>, vector<1x8x32xf32>,
    return
  }
  func.func @transform_0(%arg0: i32, %arg1: i32) -> (i32, i32, i32) {
    %c0_i32 = arith.constant 0 : i32
    %c0_i32_0 = arith.constant 0 : i32
    %c0_i32_1 = arith.constant 0 : i32
    return %arg0, %c0_i32, %c0_i32_0 : i32, i32, i32
  }
  func.func @transform_1(%arg0: i32, %arg1: i32) -> (i32, i32) {
    %c0_i32 = arith.constant 0 : i32
    %c0_i32_0 = arith.constant 0 : i32
    %c0_i32_1 = arith.constant 0 : i32
    return %c0_i32, %c0_i32_0 : i32, i32
  }
  func.func @transform_2(%arg0: i32, %arg1: i32) -> (i32, i32) {
    %c0_i32 = arith.constant 0 : i32
    %c0_i32_0 = arith.constant 0 : i32
    %c0_i32_1 = arith.constant 0 : i32
    return %c0_i32, %c0_i32_0 : i32, i32
  }
  func.func @transform_3(%arg0: i32, %arg1: i32) -> (i32, i32, i32) {
    %c0_i32 = arith.constant 0 : i32
    %c0_i32_0 = arith.constant 0 : i32
    return %arg0, %arg1, %c0_i32 : i32, i32, i32
  }
}

</mosaic_0001>

<llo_original>
// kernel: tpu_custom_call.1
$region0: #{tpu_custom_call.1}
  #allocation0 [shape = 'u32[]', space=smem, size = 0x4, offset = 0x4, fixed_abs, tag = 'smem constant byte address 0x4 - core index']
  #allocation1 [shape = 'u32[144,128]{1,0:T(1,128)}', space=vmem, size = 0x12000, scoped, tag = 'internal scratch']
  #allocation2 [shape = 'bf16[8,96]{1,0:T(8,128)(2,1)}', space=vmem, size = 0x800, scoped, tag = 'scratch operand']
  #allocation3 [shape = 'bf16[8,32]{1,0:T(8,128)(2,1)}', space=vmem, size = 0x800, scoped, tag = 'scratch operand']
  %s0 = inlined_call_operand.hbm [shape: f32[2,8,32], index: 0, kind: input, shape index: {}]
  %s1 = inlined_call_operand.hbm [shape: bf16[32,96], index: 1, kind: input, shape index: {}]
  %s2 = inlined_call_operand.hbm [shape: bf16[32,32], index: 2, kind: input, shape index: {}]
  %s3 = inlined_call_operand.hbm [shape: f32[2,8,32], index: 3, kind: output, shape index: {}]
  %s4 = sld [smem:[#allocation0]]
  $region61: #{tpu_custom_call.1} parent=0
    _
  %s6 = ssub.s32 1, %s4
  %s7 = scalar_select 0, %s6, %s4
  $region1: #{tpu_custom_call.1} parent=0
    #allocation4 [shape = 'u8[8192]{0}', space=vmem, size = 0x2000, scoped, tag = 'input window, operand 0']
    #allocation5 [shape = 's32[2]{0}', space=sflag, size = 0x8, scoped, tag = 'scoped memory for tpu_custom_call.1']
    #allocation6 [shape = 's32[2]{0}', space=sflag, size = 0x8, scoped, tag = 'scoped memory for tpu_custom_call.1']
    #allocation7 [shape = 'u8[8192]{0}', space=vmem, size = 0x2000, scoped, tag = 'input window, operand 1, single buffered']
    #allocation8 [shape = 's32[1]{0}', space=sflag, size = 0x4, scoped, tag = 'scoped memory for tpu_custom_call.1']
    #allocation9 [shape = 'u8[8192]{0}', space=vmem, size = 0x2000, scoped, tag = 'input window, operand 2, single buffered']
    #allocation10 [shape = 'u8[8192]{0}', space=vmem, size = 0x2000, scoped, tag = 'output window, operand 0']
    %8 = vsyncpa [#allocation5], 0
    %s9 = scalar_lea.sflag [#allocation5], 1
    %10 = vsyncpa %s9, 0
    %11 = vsyncpa [#allocation8], 0
    %12 = vsyncpa [#allocation6], 0
    %s13 = scalar_lea.sflag [#allocation6], 1
    %14 = vsyncpa %s13, 0
    loop: start=0, step=1, limit=4
    $region2: #{tpu_custom_call.1} parent=1 // loop_pre_header
      _
    $region3: #{tpu_custom_call.1} parent=1 // loop_header
      %s16 = sphi 0, %s20
      %p17 = scmp.ge.s32.totalorder %s16, 4
      %s23 = sphi 0, %s35
      %s24 = sphi 0, %s31
      %s25 = sphi 0, %s23
      %s26 = sphi 0, %s24
      %s27 = sphi 0, %s25
      %s28 = sphi 0, %s26
      %s38 = sphi 0, %s40
      %s41 = sphi 0, %s38
      %s42 = sphi 0, %s41
      %s58 = sphi 0, %s42
      %s62 = sphi 0, %s62
      %s64 = sphi 0, %s62
      %s65 = sphi 0, %s64
      %s79 = sphi 0, %s65
      %s83 = sphi 0, %s83
      %s85 = sphi 0, %s83
      %s86 = sphi 0, %s85
      %s100 = sphi 0, %s86
      %s108 = sphi 0, %s110
      %s111 = sphi 0, %s108
      %s112 = sphi 0, %s111
      %s128 = sphi 0, %s112
    $region4: #{tpu_custom_call.1} parent=1 // loop_header_branch
      %19 = sbr.rel (%p17) target = $region8
    $region5: #{tpu_custom_call.1} parent=1 // loop_body
      %s21 = ssub.s32 %s16, 1
      %s22 = ssub.s32 %s16, 2
      %s29 = sadd.s32 1, %s24
      %p30 = scmp.ge.s32.totalorder %s29, 1
      %s31 = scalar_select %p30, 0, %s29
      %s32 = sadd.s32 1, %s23
      %s33 = scalar_select %p30, %s32, %s23
      %p34 = scmp.ge.s32.totalorder %s33, 2
      %s35 = scalar_select %p34, 0, %s33
      %s36 = ssub.s32 %s23, %s35
      %p37 = scmp.eq.s32.totalorder %s36, 0
      %s39 = sadd.s32 %s38, 1
      %s40 = scalar_select %p37, %s38, %s39
      %p43 = pneg %p37
      %p44 = scmp.eq.s32.totalorder %s16, 1
      %p45 = por %p43, %p44
      %p46 = scmp.ne.s32.totalorder %s38, %s41
      %p47 = scmp.eq.s32.totalorder %s16, 0
      %p48 = por %p46, %p47
      %p49 = scmp.ne.s32.totalorder %s38, %s41
      %p50 = scmp.eq.s32.totalorder %s21, 1
      %p51 = por %p49, %p50
      %p52 = scmp.ne.s32.totalorder %s41, %s42
      %p53 = scmp.eq.s32.totalorder %s21, 0
      %p54 = por %p52, %p53
      %p55 = scmp.ne.s32.totalorder %s41, %s42
      %p56 = scmp.eq.s32.totalorder %s22, 1
      %p57 = por %p55, %p56
      %p59 = scmp.ne.s32.totalorder %s42, %s58
      %p60 = scmp.eq.s32.totalorder %s22, 0
      %p61 = por %p59, %p60
      %s63 = sadd.s32 %s62, 1
      %p66 = scmp.eq.s32.totalorder %s16, 1
      %p67 = scmp.ne.s32.totalorder %s62, %s64
      %p68 = scmp.eq.s32.totalorder %s16, 0
      %p69 = por %p67, %p68
      %p70 = scmp.ne.s32.totalorder %s62, %s64
      %p71 = scmp.eq.s32.totalorder %s21, 1
      %p72 = por %p70, %p71
      %p73 = scmp.ne.s32.totalorder %s64, %s65
      %p74 = scmp.eq.s32.totalorder %s21, 0
      %p75 = por %p73, %p74
      %p76 = scmp.ne.s32.totalorder %s64, %s65
      %p77 = scmp.eq.s32.totalorder %s22, 1
      %p78 = por %p76, %p77
      %p80 = scmp.ne.s32.totalorder %s65, %s79
      %p81 = scmp.eq.s32.totalorder %s22, 0
      %p82 = por %p80, %p81
      %s84 = sadd.s32 %s83, 1
      %p87 = scmp.eq.s32.totalorder %s16, 1
      %p88 = scmp.ne.s32.totalorder %s83, %s85
      %p89 = scmp.eq.s32.totalorder %s16, 0
      %p90 = por %p88, %p89
      %p91 = scmp.ne.s32.totalorder %s83, %s85
      %p92 = scmp.eq.s32.totalorder %s21, 1
      %p93 = por %p91, %p92
      %p94 = scmp.ne.s32.totalorder %s85, %s86
      %p95 = scmp.eq.s32.totalorder %s21, 0
      %p96 = por %p94, %p95
      %p97 = scmp.ne.s32.totalorder %s85, %s86
      %p98 = scmp.eq.s32.totalorder %s22, 1
      %p99 = por %p97, %p98
      %p101 = scmp.ne.s32.totalorder %s86, %s100
      %p102 = scmp.eq.s32.totalorder %s22, 0
      %p103 = por %p101, %p102
      %s104 = ssub.s32 %s23, %s35
      %s105 = ssub.s32 %s24, %s31
      %s106 = sor.u32 %s104, %s105
      %p107 = scmp.eq.s32.totalorder %s106, 0
      %s109 = sadd.s32 %s108, 1
      %s110 = scalar_select %p107, %s108, %s109
      %p113 = pneg %p107
      %p114 = scmp.eq.s32.totalorder %s16, 1
      %p115 = por %p113, %p114
      %p116 = scmp.ne.s32.totalorder %s108, %s111
      %p117 = scmp.eq.s32.totalorder %s16, 0
      %p118 = por %p116, %p117
      %p119 = scmp.ne.s32.totalorder %s108, %s111
      %p120 = scmp.eq.s32.totalorder %s21, 1
      %p121 = por %p119, %p120
      %p122 = scmp.ne.s32.totalorder %s111, %s112
      %p123 = scmp.eq.s32.totalorder %s21, 0
      %p124 = por %p122, %p123
      %p125 = scmp.ne.s32.totalorder %s111, %s112
      %p126 = scmp.eq.s32.totalorder %s22, 1
      %p127 = por %p125, %p126
      %p129 = scmp.ne.s32.totalorder %s112, %s128
      %p130 = scmp.eq.s32.totalorder %s22, 0
      %p131 = por %p129, %p130
      %p132 = scmp.le.s32.totalorder 1, %s16
      %p133 = scmp.lt.s32.totalorder %s16, 3
      %p134 = pnand %p132, %p133
      %p135 = pneg %p134
      // Predicated region
      $region9: #{tpu_custom_call.1} parent=5 // pred_check
        _
      $region10: #{tpu_custom_call.1} parent=5 // pred_check_branch
        %137 = sbr.rel (%p134) target = $region12
      $region11: #{tpu_custom_call.1} parent=5 // pred_region
        %s138 = ssub.s32 %s16, 1
        // Predicated region
        $region13: #{tpu_custom_call.1} parent=11 // pred_check
          %p139 = pneg %p75
        $region14: #{tpu_custom_call.1} parent=11 // pred_check_branch
          %141 = sbr.rel (%p139) target = $region16
        $region15: #{tpu_custom_call.1} parent=11 // pred_region
          %s143 = ssub.s32 256, 256
          %144 = vsyncadd [#allocation8], %s143
          %s145 = sshll.u32 [#allocation7], 4
          %s146 = int_to_ptr.vmem [resolvable:$true] %s145
          %151 = dma.hbm_to_vmem [thread:$0]  %s1, 256, %s146, [#allocation8], 64, 64, 4
        $region16: #{tpu_custom_call.1} parent=11 // pred_fallthru
          _
        // Predicated region
        $region17: #{tpu_custom_call.1} parent=11 // pred_check
          %p152 = pneg %p96
        $region18: #{tpu_custom_call.1} parent=11 // pred_check_branch
          %154 = sbr.rel (%p152) target = $region20
        $region19: #{tpu_custom_call.1} parent=11 // pred_region
          %s156 = ssub.s32 256, 256
          %157 = vsyncadd [#allocation8], %s156
          %s158 = sshll.u32 [#allocation9], 4
          %s159 = int_to_ptr.vmem [resolvable:$true] %s158
          %164 = dma.hbm_to_vmem [thread:$0]  %s2, 256, %s159, [#allocation8], 64, 64, 4
        $region20: #{tpu_custom_call.1} parent=11 // pred_fallthru
          _
      $region12: #{tpu_custom_call.1} parent=5 // pred_fallthru
        _
      %p165 = scmp.lt.s32.totalorder %s16, 2
      // Predicated region
      $region21: #{tpu_custom_call.1} parent=5 // pred_check
        %p166 = pneg %p165
      $region22: #{tpu_custom_call.1} parent=5 // pred_check_branch
        %168 = sbr.rel (%p166) target = $region24
      $region23: #{tpu_custom_call.1} parent=5 // pred_region
        // Predicated region
        $region25: #{tpu_custom_call.1} parent=23 // pred_check
          %p169 = pneg %p48
        $region26: #{tpu_custom_call.1} parent=23 // pred_check_branch
          %171 = sbr.rel (%p169) target = $region28
        $region27: #{tpu_custom_call.1} parent=23 // pred_region
          %s172 = sand.u32 %s38, 1
          %s173 = scalar_lea.sflag [#allocation5], %s172
          %s174 = sand.u32 %s38, 1
          %s175 = smul.addr %s174, 8
          %s176 = scalar_lea.vmem [#allocation4], %s175
          %s178 = ssub.s32 128, 128
          %179 = vsyncadd %s173, %s178
          %s180 = smul.addr %s23, 128
          %s181 = scalar_lea.hbm %s0, %s180
          %s183 = sshll.u32 %s176, 4
          %s184 = int_to_ptr.vmem [resolvable:$true] %s183
          %186 = dma.hbm_to_vmem [thread:$0]  %s181, 128, %s184, %s173
        $region28: #{tpu_custom_call.1} parent=23 // pred_fallthru
          _
      $region24: #{tpu_custom_call.1} parent=5 // pred_fallthru
        _
      %p187 = scmp.le.s32.totalorder 1, %s16
      %p188 = scmp.lt.s32.totalorder %s16, 3
      %p189 = pnand %p187, %p188
      %p190 = pneg %p189
      // Predicated region
      $region29: #{tpu_custom_call.1} parent=5 // pred_check
        _
      $region30: #{tpu_custom_call.1} parent=5 // pred_check_branch
        %192 = sbr.rel (%p189) target = $region32
      $region31: #{tpu_custom_call.1} parent=5 // pred_region
        %s193 = ssub.s32 %s16, 1
        %s194 = sand.u32 %s41, 1
        %s195 = scalar_lea.sflag [#allocation5], %s194
        %s196 = sand.u32 %s41, 1
        %s197 = smul.addr %s196, 8
        %s198 = scalar_lea.vmem [#allocation4], %s197
        // Predicated region
        $region33: #{tpu_custom_call.1} parent=31 // pred_check
          %p199 = pneg %p54
        $region34: #{tpu_custom_call.1} parent=31 // pred_check_branch
          %201 = sbr.rel (%p199) target = $region36
        $region35: #{tpu_custom_call.1} parent=31 // pred_region
          %202 = dma.done %s195, 128
        $region36: #{tpu_custom_call.1} parent=31 // pred_fallthru
          _
        // Predicated region
        $region37: #{tpu_custom_call.1} parent=31 // pred_check
          %p203 = pneg %p75
        $region38: #{tpu_custom_call.1} parent=31 // pred_check_branch
          %205 = sbr.rel (%p203) target = $region40
        $region39: #{tpu_custom_call.1} parent=31 // pred_region
          %206 = dma.done [#allocation8], 256
        $region40: #{tpu_custom_call.1} parent=31 // pred_fallthru
          _
        // Predicated region
        $region41: #{tpu_custom_call.1} parent=31 // pred_check
          %p207 = pneg %p96
        $region42: #{tpu_custom_call.1} parent=31 // pred_check_branch
          %209 = sbr.rel (%p207) target = $region44
        $region43: #{tpu_custom_call.1} parent=31 // pred_region
          %210 = dma.done [#allocation8], 256
        $region44: #{tpu_custom_call.1} parent=31 // pred_fallthru
          _
        %s211 = sand.u32 %s41, 1
        %s212 = scalar_lea.sflag [#allocation5], %s211
        %s213 = sand.u32 %s41, 1
        %s214 = smul.addr %s213, 8
        %s215 = scalar_lea.vmem [#allocation4], %s214
        %p216 = pneg %p54
        %p217 = pneg %p51
        %p218 = pneg %p75
        %p219 = pneg %p72
        %p220 = pneg %p96
        %p221 = pneg %p93
        %p222 = pneg %p124
        %p223 = pneg %p121
        %s224 = sand.u32 %s111, 1
        %s225 = scalar_lea.sflag [#allocation6], %s224
        %s226 = sand.u32 %s111, 1
        %s227 = smul.addr %s226, 8
        %s228 = scalar_lea.vmem [#allocation10], %s227
        %p230 = scmp.eq.s32.totalorder %s26, 0
        // Predicated region
        $region45: #{tpu_custom_call.1} parent=31 // pred_check
          %p231 = pneg %p230
        $region46: #{tpu_custom_call.1} parent=31 // pred_check_branch
          %233 = sbr.rel (%p231) target = $region48
        $region47: #{tpu_custom_call.1} parent=31 // pred_region
          %v234 = vld [vmem:[%s198] sm:$0xff]
          %v235 = vpack.c.bf16 %v234, %v234
          %v236 = vld [vmem:[#allocation7] sm:$0xf]
          %v237 = vld [vmem:[#allocation7 + $0x4] sm:$0xf]
          %v238 = vld [vmem:[#allocation7 + $0x8] sm:$0xf]
          %v239 = vld [vmem:[#allocation7 + $0xc] sm:$0xf]
          %v244 = vunpack.c.l.b16 %v236
          %v245 = vunpack.c.l.b16 %v237
          %v246 = vunpack.c.l.b16 %v238
          %v247 = vunpack.c.l.b16 %v239
          %v248 = vpack.c.b16 %v245, %v244
          %v249 = vpack.c.b16 %v247, %v246
          %vm252 = vcmask 261120
          %v254 = vsel %vm252, %v235, 0
          %256 = vmatprep.subr.bf16.mxu0 0
          %257 = vmatpush1.bf16.msra.mxu0 %v248
          %258 = vmatprep.subr.bf16.mxu0 0
          %259 = vmatpush1.bf16.msra.mxu0 %v249
          %260 = vmatprep.subr.bf16.mxu0 0
          %261 = vmatpush1.bf16.msra.mxu0 0
          %262 = vmatprep.subr.bf16.mxu0 0
          %263 = vmatpush1.bf16.msra.mxu0 0
          %264 = vmatprep.subr.bf16.mxu0 0
          %265 = vmatpush1.bf16.msra.mxu0 0
          %266 = vmatprep.subr.bf16.mxu0 0
          %267 = vmatpush1.bf16.msra.mxu0 0
          %268 = vmatprep.subr.bf16.mxu0 0
          %269 = vmatpush1.bf16.msra.mxu0 0
          %270 = vmatprep.subr.bf16.mxu0 0
          %271 = vmatpush1.bf16.msra.mxu0 0
          %272 = vmatprep.subr.bf16.mxu0 0
          %273 = vmatpush1.bf16.msra.mxu0 0
          %274 = vmatprep.subr.bf16.mxu0 0
          %275 = vmatpush1.bf16.msra.mxu0 0
          %276 = vmatprep.subr.bf16.mxu0 0
          %277 = vmatpush1.bf16.msra.mxu0 0
          %278 = vmatprep.subr.bf16.mxu0 0
          %279 = vmatpush1.bf16.msra.mxu0 0
          %280 = vmatprep.subr.bf16.mxu0 0
          %281 = vmatpush1.bf16.msra.mxu0 0
          %282 = vmatprep.subr.bf16.mxu0 0
          %283 = vmatpush1.bf16.msra.mxu0 0
          %284 = vmatprep.subr.bf16.mxu0 0
          %285 = vmatpush1.bf16.msra.mxu0 0
          %286 = vmatprep.subr.bf16.mxu0 0
          %287 = vmatpush1.bf16.msra.mxu0 0
          %288 = vmatprep.mubr.bf16.mxu0 0
          %289 = vmatmul.mubr.bf16.gmra.mrb[0].mxu0 %v254
          %v290 = vpop.f32.mrb[0].mxu0
          %v291 = vadd.f32 0.0, %v290
          %v292 = vpop.f32.mrb[0].mxu0
          %v293 = vpop.f32.mrb[0].mxu0
          %v294 = vpop.f32.mrb[0].mxu0
          %295 = vdwg.mxu0
          %v296 = vpack.c.bf16 %v291, %v291
          %vm297 = vcmask 781312
          %298 = vst.msk [vmem:[#allocation2] sm:$0xf] %vm297, %v296
        $region48: #{tpu_custom_call.1} parent=31 // pred_fallthru
          _
        %s299 = smul.u32 %s26, 8
        %v300 = vlaneseq
        %v301 = vshrl.u32 %v300, 7
        %v302 = vstv %s299
        %v303 = vadd.s32 %v301, %v302
        %v304 = vlaneseq
        %v305 = vand.u32 %v304, 127
        %vm306 = vcmp.le.s32.totalorder %v305, %v303
        %v307 = vsel %vm306, 0.0, -1e+30
        %s308 = sshra.s32 %s299, 3
        %s309 = sand.u32 %s299, 7
        %s310 = smul.addr %s308, 4
        %s311 = scalar_lea.vmem [#allocation2], %s310
        %v312 = vld [vmem:[%s311] sm:$0xf]
        %v313 = vld [vmem:[#allocation2] sm:$0xf]
        %v315 = vunpack.c.l.b16 %v313
        %v316 = vpack.c.b16 %v315, %v315
        %317 = vrot.lane.b32.xlu0 %v316, 96
        %v318 = vpop.permute.xlu0 %317
        %vm319 = vcmask 64512
        %v321 = vsel %vm319, %v312, 0
        %v324 = vsel %vm319, %v318, 0
        %326 = vmatprep.subr.bf16.mxu0 0
        %327 = vmatpush1.bf16.xpose.msra.mxu0 %v324
        %328 = vmatprep.subr.bf16.mxu0 0
        %329 = vmatpush1.bf16.xpose.msra.mxu0 0
        %330 = vmatprep.subr.bf16.mxu0 0
        %331 = vmatpush1.bf16.xpose.msra.mxu0 0
        %332 = vmatprep.subr.bf16.mxu0 0
        %333 = vmatpush1.bf16.xpose.msra.mxu0 0
        %334 = vmatprep.subr.bf16.mxu0 0
        %335 = vmatpush1.bf16.xpose.msra.mxu0 0
        %336 = vmatprep.subr.bf16.mxu0 0
        %337 = vmatpush1.bf16.xpose.msra.mxu0 0
        %338 = vmatprep.subr.bf16.mxu0 0
        %339 = vmatpush1.bf16.xpose.msra.mxu0 0
        %340 = vmatprep.subr.bf16.mxu0 0
        %341 = vmatpush1.bf16.xpose.msra.mxu0 0
        %342 = vmatprep.subr.bf16.mxu0 0
        %343 = vmatpush1.bf16.xpose.msra.mxu0 0
        %344 = vmatprep.subr.bf16.mxu0 0
        %345 = vmatpush1.bf16.xpose.msra.mxu0 0
        %346 = vmatprep.subr.bf16.mxu0 0
        %347 = vmatpush1.bf16.xpose.msra.mxu0 0
        %348 = vmatprep.subr.bf16.mxu0 0
        %349 = vmatpush1.bf16.xpose.msra.mxu0 0
        %350 = vmatprep.subr.bf16.mxu0 0
        %351 = vmatpush1.bf16.xpose.msra.mxu0 0
        %352 = vmatprep.subr.bf16.mxu0 0
        %353 = vmatpush1.bf16.xpose.msra.mxu0 0
        %354 = vmatprep.subr.bf16.mxu0 0
        %355 = vmatpush1.bf16.xpose.msra.mxu0 0
        %356 = vmatprep.subr.bf16.mxu0 0
        %357 = vmatpush1.bf16.xpose.msra.mxu0 0
        %358 = vmatprep.mubr.bf16.mxu0 0
        %359 = vmatmul.mubr.bf16.gmra.mrb[0].mxu0 %v321
        %v360 = vpop.f32.mrb[0].mxu0
        %v361 = vadd.f32 %v307, %v360
        %v362 = vpop.f32.mrb[0].mxu0
        %v363 = vpop.f32.mrb[0].mxu0
        %v364 = vpop.f32.mrb[0].mxu0
        %365 = vdwg.mxu0
        %v366 = vsel %vm319, %v361, -inf
        %367 = vmax.xlane.f32.xlu0 %v366
        %v368 = vpop.xlane.xlu0 %367
        %v369 = vsub.f32 %v361, %v368
        %v370 = vmul.f32 %v369, 1.442695
        %v371 = vpow.pop %v370
        %v372 = vsel %vm319, %v371, 0.0
        %373 = vadd.xlane.f32.xlu0 %v372
        %v374 = vpop.xlane.xlu0 %373
        %v375 = vpack.c.bf16 %v371, %v371
        %376 = vrot.lane.b32.xlu0 %v316, 64
        %v377 = vpop.permute.xlu0 %376
        %v379 = vsel %vm319, %v375, 0
        %vm381 = vcmask 1043456
        %v383 = vsel %vm381, %v377, 0
        %385 = vmatprep.subr.bf16.mxu0 0
        %386 = vmatpush1.bf16.msra.mxu0 %v383
        %387 = vmatprep.subr.bf16.mxu0 0
        %388 = vmatpush1.bf16.msra.mxu0 0
        %389 = vmatprep.subr.bf16.mxu0 0
        %390 = vmatpush1.bf16.msra.mxu0 0
        %391 = vmatprep.subr.bf16.mxu0 0
        %392 = vmatpush1.bf16.msra.mxu0 0
        %393 = vmatprep.subr.bf16.mxu0 0
        %394 = vmatpush1.bf16.msra.mxu0 0
        %395 = vmatprep.subr.bf16.mxu0 0
        %396 = vmatpush1.bf16.msra.mxu0 0
        %397 = vmatprep.subr.bf16.mxu0 0
        %398 = vmatpush1.bf16.msra.mxu0 0
        %399 = vmatprep.subr.bf16.mxu0 0
        %400 = vmatpush1.bf16.msra.mxu0 0
        %401 = vmatprep.subr.bf16.mxu0 0
        %402 = vmatpush1.bf16.msra.mxu0 0
        %403 = vmatprep.subr.bf16.mxu0 0
        %404 = vmatpush1.bf16.msra.mxu0 0
        %405 = vmatprep.subr.bf16.mxu0 0
        %406 = vmatpush1.bf16.msra.mxu0 0
        %407 = vmatprep.subr.bf16.mxu0 0
        %408 = vmatpush1.bf16.msra.mxu0 0
        %409 = vmatprep.subr.bf16.mxu0 0
        %410 = vmatpush1.bf16.msra.mxu0 0
        %411 = vmatprep.subr.bf16.mxu0 0
        %412 = vmatpush1.bf16.msra.mxu0 0
        %413 = vmatprep.subr.bf16.mxu0 0
        %414 = vmatpush1.bf16.msra.mxu0 0
        %415 = vmatprep.subr.bf16.mxu0 0
        %416 = vmatpush1.bf16.msra.mxu0 0
        %417 = vmatprep.mubr.bf16.mxu0 0
        %418 = vmatmul.mubr.bf16.gmra.mrb[0].mxu0 %v379
        %v419 = vpop.f32.mrb[0].mxu0
        %v420 = vadd.f32 0.0, %v419
        %v421 = vpop.f32.mrb[0].mxu0
        %v422 = vpop.f32.mrb[0].mxu0
        %v423 = vpop.f32.mrb[0].mxu0
        %424 = vdwg.mxu0
        %v425 = vrcp.pop %v374
        %v426 = vmul.f32 %v420, %v425
        %v427 = vpack.c.bf16 %v426, %v426
        %vm428 = vcmask 60416
        %429 = vst.msk [vmem:[#allocation3] sm:$0xf] %vm428, %v427
        %v430 = vld [vmem:[%s311] sm:$0xf]
        %v431 = vld [vmem:[#allocation2] sm:$0xf]
        %v433 = vunpack.c.l.b16 %v430
        %v434 = vpack.c.b16 %v433, %v433
        %435 = vrot.lane.b32.xlu0 %v434, 120
        %v436 = vpop.permute.xlu0 %435
        %v438 = vunpack.c.l.b16 %v431
        %v439 = vpack.c.b16 %v438, %v438
        %440 = vrot.lane.b32.xlu0 %v439, 88
        %v441 = vpop.permute.xlu0 %440
        %v443 = vsel %vm319, %v436, 0
        %v446 = vsel %vm319, %v441, 0
        %448 = vmatprep.subr.bf16.mxu0 0
        %449 = vmatpush1.bf16.xpose.msra.mxu0 %v446
        %450 = vmatprep.subr.bf16.mxu0 0
        %451 = vmatpush1.bf16.xpose.msra.mxu0 0
        %452 = vmatprep.subr.bf16.mxu0 0
        %453 = vmatpush1.bf16.xpose.msra.mxu0 0
        %454 = vmatprep.subr.bf16.mxu0 0
        %455 = vmatpush1.bf16.xpose.msra.mxu0 0
        %456 = vmatprep.subr.bf16.mxu0 0
        %457 = vmatpush1.bf16.xpose.msra.mxu0 0
        %458 = vmatprep.subr.bf16.mxu0 0
        %459 = vmatpush1.bf16.xpose.msra.mxu0 0
        %460 = vmatprep.subr.bf16.mxu0 0
        %461 = vmatpush1.bf16.xpose.msra.mxu0 0
        %462 = vmatprep.subr.bf16.mxu0 0
        %463 = vmatpush1.bf16.xpose.msra.mxu0 0
        %464 = vmatprep.subr.bf16.mxu0 0
        %465 = vmatpush1.bf16.xpose.msra.mxu0 0
        %466 = vmatprep.subr.bf16.mxu0 0
        %467 = vmatpush1.bf16.xpose.msra.mxu0 0
        %468 = vmatprep.subr.bf16.mxu0 0
        %469 = vmatpush1.bf16.xpose.msra.mxu0 0
        %470 = vmatprep.subr.bf16.mxu0 0
        %471 = vmatpush1.bf16.xpose.msra.mxu0 0
        %472 = vmatprep.subr.bf16.mxu0 0
        %473 = vmatpush1.bf16.xpose.msra.mxu0 0
        %474 = vmatprep.subr.bf16.mxu0 0
        %475 = vmatpush1.bf16.xpose.msra.mxu0 0
        %476 = vmatprep.subr.bf16.mxu0 0
        %477 = vmatpush1.bf16.xpose.msra.mxu0 0
        %478 = vmatprep.subr.bf16.mxu0 0
        %479 = vmatpush1.bf16.xpose.msra.mxu0 0
        %480 = vmatprep.mubr.bf16.mxu0 0
        %481 = vmatmul.mubr.bf16.gmra.mrb[0].mxu0 %v443
        %v482 = vpop.f32.mrb[0].mxu0
        %v483 = vadd.f32 %v307, %v482
        %v484 = vpop.f32.mrb[0].mxu0
        %v485 = vpop.f32.mrb[0].mxu0
        %v486 = vpop.f32.mrb[0].mxu0
        %487 = vdwg.mxu0
        %v488 = vsel %vm319, %v483, -inf
        %489 = vmax.xlane.f32.xlu0 %v488
        %v490 = vpop.xlane.xlu0 %489
        %v491 = vsub.f32 %v483, %v490
        %v492 = vmul.f32 %v491, 1.442695
        %v493 = vpow.pop %v492
        %v494 = vsel %vm319, %v493, 0.0
        %495 = vadd.xlane.f32.xlu0 %v494
        %v496 = vpop.xlane.xlu0 %495
        %v497 = vpack.c.bf16 %v493, %v493
        %498 = vrot.lane.b32.xlu0 %v439, 56
        %v499 = vpop.permute.xlu0 %498
        %v501 = vsel %vm319, %v497, 0
        %v504 = vsel %vm381, %v499, 0
        %506 = vmatprep.subr.bf16.mxu0 0
        %507 = vmatpush1.bf16.msra.mxu0 %v504
        %508 = vmatprep.subr.bf16.mxu0 0
        %509 = vmatpush1.bf16.msra.mxu0 0
        %510 = vmatprep.subr.bf16.mxu0 0
        %511 = vmatpush1.bf16.msra.mxu0 0
        %512 = vmatprep.subr.bf16.mxu0 0
        %513 = vmatpush1.bf16.msra.mxu0 0
        %514 = vmatprep.subr.bf16.mxu0 0
        %515 = vmatpush1.bf16.msra.mxu0 0
        %516 = vmatprep.subr.bf16.mxu0 0
        %517 = vmatpush1.bf16.msra.mxu0 0
        %518 = vmatprep.subr.bf16.mxu0 0
        %519 = vmatpush1.bf16.msra.mxu0 0
        %520 = vmatprep.subr.bf16.mxu0 0
        %521 = vmatpush1.bf16.msra.mxu0 0
        %522 = vmatprep.subr.bf16.mxu0 0
        %523 = vmatpush1.bf16.msra.mxu0 0
        %524 = vmatprep.subr.bf16.mxu0 0
        %525 = vmatpush1.bf16.msra.mxu0 0
        %526 = vmatprep.subr.bf16.mxu0 0
        %527 = vmatpush1.bf16.msra.mxu0 0
        %528 = vmatprep.subr.bf16.mxu0 0
        %529 = vmatpush1.bf16.msra.mxu0 0
        %530 = vmatprep.subr.bf16.mxu0 0
        %531 = vmatpush1.bf16.msra.mxu0 0
        %532 = vmatprep.subr.bf16.mxu0 0
        %533 = vmatpush1.bf16.msra.mxu0 0
        %534 = vmatprep.subr.bf16.mxu0 0
        %535 = vmatpush1.bf16.msra.mxu0 0
        %536 = vmatprep.subr.bf16.mxu0 0
        %537 = vmatpush1.bf16.msra.mxu0 0
        %538 = vmatprep.mubr.bf16.mxu0 0
        %539 = vmatmul.mubr.bf16.gmra.mrb[0].mxu0 %v501
        %v540 = vpop.f32.mrb[0].mxu0
        %v541 = vadd.f32 0.0, %v540
        %v542 = vpop.f32.mrb[0].mxu0
        %v543 = vpop.f32.mrb[0].mxu0
        %v544 = vpop.f32.mrb[0].mxu0
        %545 = vdwg.mxu0
        %v546 = vrcp.pop %v496
        %v547 = vmul.f32 %v541, %v546
        %v548 = vpack.c.bf16 %v547, %v547
        %v550 = vunpack.c.l.b16 %v548
        %v551 = vpack.c.b16 %v550, %v550
        %552 = vrot.lane.b32.xlu0 %v551, 8
        %v553 = vpop.permute.xlu0 %552
        %vm555 = vcmask 126016
        %556 = vst.msk [vmem:[#allocation3] sm:$0xf] %vm555, %v553
        %v557 = vld [vmem:[%s311] sm:$0xf]
        %v558 = vld [vmem:[#allocation2] sm:$0xf]
        %v560 = vunpack.c.l.b16 %v557
        %v561 = vpack.c.b16 %v560, %v560
        %562 = vrot.lane.b32.xlu0 %v561, 112
        %v563 = vpop.permute.xlu0 %562
        %v565 = vunpack.c.l.b16 %v558
        %v566 = vpack.c.b16 %v565, %v565
        %567 = vrot.lane.b32.xlu0 %v566, 80
        %v568 = vpop.permute.xlu0 %567
        %v570 = vsel %vm319, %v563, 0
        %v573 = vsel %vm319, %v568, 0
        %575 = vmatprep.subr.bf16.mxu0 0
        %576 = vmatpush1.bf16.xpose.msra.mxu0 %v573
        %577 = vmatprep.subr.bf16.mxu0 0
        %578 = vmatpush1.bf16.xpose.msra.mxu0 0
        %579 = vmatprep.subr.bf16.mxu0 0
        %580 = vmatpush1.bf16.xpose.msra.mxu0 0
        %581 = vmatprep.subr.bf16.mxu0 0
        %582 = vmatpush1.bf16.xpose.msra.mxu0 0
        %583 = vmatprep.subr.bf16.mxu0 0
        %584 = vmatpush1.bf16.xpose.msra.mxu0 0
        %585 = vmatprep.subr.bf16.mxu0 0
        %586 = vmatpush1.bf16.xpose.msra.mxu0 0
        %587 = vmatprep.subr.bf16.mxu0 0
        %588 = vmatpush1.bf16.xpose.msra.mxu0 0
        %589 = vmatprep.subr.bf16.mxu0 0
        %590 = vmatpush1.bf16.xpose.msra.mxu0 0
        %591 = vmatprep.subr.bf16.mxu0 0
        %592 = vmatpush1.bf16.xpose.msra.mxu0 0
        %593 = vmatprep.subr.bf16.mxu0 0
        %594 = vmatpush1.bf16.xpose.msra.mxu0 0
        %595 = vmatprep.subr.bf16.mxu0 0
        %596 = vmatpush1.bf16.xpose.msra.mxu0 0
        %597 = vmatprep.subr.bf16.mxu0 0
        %598 = vmatpush1.bf16.xpose.msra.mxu0 0
        %599 = vmatprep.subr.bf16.mxu0 0
        %600 = vmatpush1.bf16.xpose.msra.mxu0 0
        %601 = vmatprep.subr.bf16.mxu0 0
        %602 = vmatpush1.bf16.xpose.msra.mxu0 0
        %603 = vmatprep.subr.bf16.mxu0 0
        %604 = vmatpush1.bf16.xpose.msra.mxu0 0
        %605 = vmatprep.subr.bf16.mxu0 0
        %606 = vmatpush1.bf16.xpose.msra.mxu0 0
        %607 = vmatprep.mubr.bf16.mxu0 0
        %608 = vmatmul.mubr.bf16.gmra.mrb[0].mxu0 %v570
        %v609 = vpop.f32.mrb[0].mxu0
        %v610 = vadd.f32 %v307, %v609
        %v611 = vpop.f32.mrb[0].mxu0
        %v612 = vpop.f32.mrb[0].mxu0
        %v613 = vpop.f32.mrb[0].mxu0
        %614 = vdwg.mxu0
        %v615 = vsel %vm319, %v610, -inf
        %616 = vmax.xlane.f32.xlu0 %v615
        %v617 = vpop.xlane.xlu0 %616
        %v618 = vsub.f32 %v610, %v617
        %v619 = vmul.f32 %v618, 1.442695
        %v620 = vpow.pop %v619
        %v621 = vsel %vm319, %v620, 0.0
        %622 = vadd.xlane.f32.xlu0 %v621
        %v623 = vpop.xlane.xlu0 %622
        %v624 = vpack.c.bf16 %v620, %v620
        %625 = vrot.lane.b32.xlu0 %v566, 48
        %v626 = vpop.permute.xlu0 %625
        %v628 = vsel %vm319, %v624, 0
        %v631 = vsel %vm381, %v626, 0
        %633 = vmatprep.subr.bf16.mxu0 0
        %634 = vmatpush1.bf16.msra.mxu0 %v631
        %635 = vmatprep.subr.bf16.mxu0 0
        %636 = vmatpush1.bf16.msra.mxu0 0
        %637 = vmatprep.subr.bf16.mxu0 0
        %638 = vmatpush1.bf16.msra.mxu0 0
        %639 = vmatprep.subr.bf16.mxu0 0
        %640 = vmatpush1.bf16.msra.mxu0 0
        %641 = vmatprep.subr.bf16.mxu0 0
        %642 = vmatpush1.bf16.msra.mxu0 0
        %643 = vmatprep.subr.bf16.mxu0 0
        %644 = vmatpush1.bf16.msra.mxu0 0
        %645 = vmatprep.subr.bf16.mxu0 0
        %646 = vmatpush1.bf16.msra.mxu0 0
        %647 = vmatprep.subr.bf16.mxu0 0
        %648 = vmatpush1.bf16.msra.mxu0 0
        %649 = vmatprep.subr.bf16.mxu0 0
        %650 = vmatpush1.bf16.msra.mxu0 0
        %651 = vmatprep.subr.bf16.mxu0 0
        %652 = vmatpush1.bf16.msra.mxu0 0
        %653 = vmatprep.subr.bf16.mxu0 0
        %654 = vmatpush1.bf16.msra.mxu0 0
        %655 = vmatprep.subr.bf16.mxu0 0
        %656 = vmatpush1.bf16.msra.mxu0 0
        %657 = vmatprep.subr.bf16.mxu0 0
        %658 = vmatpush1.bf16.msra.mxu0 0
        %659 = vmatprep.subr.bf16.mxu0 0
        %660 = vmatpush1.bf16.msra.mxu0 0
        %661 = vmatprep.subr.bf16.mxu0 0
        %662 = vmatpush1.bf16.msra.mxu0 0
        %663 = vmatprep.subr.bf16.mxu0 0
        %664 = vmatpush1.bf16.msra.mxu0 0
        %665 = vmatprep.mubr.bf16.mxu0 0
        %666 = vmatmul.mubr.bf16.gmra.mrb[0].mxu0 %v628
        %v667 = vpop.f32.mrb[0].mxu0
        %v668 = vadd.f32 0.0, %v667
        %v669 = vpop.f32.mrb[0].mxu0
        %v670 = vpop.f32.mrb[0].mxu0
        %v671 = vpop.f32.mrb[0].mxu0
        %672 = vdwg.mxu0
        %v673 = vrcp.pop %v623
        %v674 = vmul.f32 %v668, %v673
        %v675 = vpack.c.bf16 %v674, %v674
        %v677 = vunpack.c.l.b16 %v675
        %v678 = vpack.c.b16 %v677, %v677
        %679 = vrot.lane.b32.xlu0 %v678, 16
        %v680 = vpop.permute.xlu0 %679
        %vm682 = vcmask 191616
        %683 = vst.msk [vmem:[#allocation3] sm:$0xf] %vm682, %v680
        %v684 = vld [vmem:[%s311] sm:$0xf]
        %v685 = vld [vmem:[#allocation2] sm:$0xf]
        %v687 = vunpack.c.l.b16 %v684
        %v688 = vpack.c.b16 %v687, %v687
        %689 = vrot.lane.b32.xlu0 %v688, 104
        %v690 = vpop.permute.xlu0 %689
        %v692 = vunpack.c.l.b16 %v685
        %v693 = vpack.c.b16 %v692, %v692
        %694 = vrot.lane.b32.xlu0 %v693, 72
        %v695 = vpop.permute.xlu0 %694
        %v697 = vsel %vm319, %v690, 0
        %v700 = vsel %vm319, %v695, 0
        %702 = vmatprep.subr.bf16.mxu0 0
        %703 = vmatpush1.bf16.xpose.msra.mxu0 %v700
        %704 = vmatprep.subr.bf16.mxu0 0
        %705 = vmatpush1.bf16.xpose.msra.mxu0 0
        %706 = vmatprep.subr.bf16.mxu0 0
        %707 = vmatpush1.bf16.xpose.msra.mxu0 0
        %708 = vmatprep.subr.bf16.mxu0 0
        %709 = vmatpush1.bf16.xpose.msra.mxu0 0
        %710 = vmatprep.subr.bf16.mxu0 0
        %711 = vmatpush1.bf16.xpose.msra.mxu0 0
        %712 = vmatprep.subr.bf16.mxu0 0
        %713 = vmatpush1.bf16.xpose.msra.mxu0 0
        %714 = vmatprep.subr.bf16.mxu0 0
        %715 = vmatpush1.bf16.xpose.msra.mxu0 0
        %716 = vmatprep.subr.bf16.mxu0 0
        %717 = vmatpush1.bf16.xpose.msra.mxu0 0
        %718 = vmatprep.subr.bf16.mxu0 0
        %719 = vmatpush1.bf16.xpose.msra.mxu0 0
        %720 = vmatprep.subr.bf16.mxu0 0
        %721 = vmatpush1.bf16.xpose.msra.mxu0 0
        %722 = vmatprep.subr.bf16.mxu0 0
        %723 = vmatpush1.bf16.xpose.msra.mxu0 0
        %724 = vmatprep.subr.bf16.mxu0 0
        %725 = vmatpush1.bf16.xpose.msra.mxu0 0
        %726 = vmatprep.subr.bf16.mxu0 0
        %727 = vmatpush1.bf16.xpose.msra.mxu0 0
        %728 = vmatprep.subr.bf16.mxu0 0
        %729 = vmatpush1.bf16.xpose.msra.mxu0 0
        %730 = vmatprep.subr.bf16.mxu0 0
        %731 = vmatpush1.bf16.xpose.msra.mxu0 0
        %732 = vmatprep.subr.bf16.mxu0 0
        %733 = vmatpush1.bf16.xpose.msra.mxu0 0
        %734 = vmatprep.mubr.bf16.mxu0 0
        %735 = vmatmul.mubr.bf16.gmra.mrb[0].mxu0 %v697
        %v736 = vpop.f32.mrb[0].mxu0
        %v737 = vadd.f32 %v307, %v736
        %v738 = vpop.f32.mrb[0].mxu0
        %v739 = vpop.f32.mrb[0].mxu0
        %v740 = vpop.f32.mrb[0].mxu0
        %741 = vdwg.mxu0
        %v742 = vsel %vm319, %v737, -inf
        %743 = vmax.xlane.f32.xlu0 %v742
        %v744 = vpop.xlane.xlu0 %743
        %v745 = vsub.f32 %v737, %v744
        %v746 = vmul.f32 %v745, 1.442695
        %v747 = vpow.pop %v746
        %v748 = vsel %vm319, %v747, 0.0
        %749 = vadd.xlane.f32.xlu0 %v748
        %v750 = vpop.xlane.xlu0 %749
        %v751 = vpack.c.bf16 %v747, %v747
        %752 = vrot.lane.b32.xlu0 %v693, 40
        %v753 = vpop.permute.xlu0 %752
        %v755 = vsel %vm319, %v751, 0
        %v758 = vsel %vm381, %v753, 0
        %760 = vmatprep.subr.bf16.mxu0 0
        %761 = vmatpush1.bf16.msra.mxu0 %v758
        %762 = vmatprep.subr.bf16.mxu0 0
        %763 = vmatpush1.bf16.msra.mxu0 0
        %764 = vmatprep.subr.bf16.mxu0 0
        %765 = vmatpush1.bf16.msra.mxu0 0
        %766 = vmatprep.subr.bf16.mxu0 0
        %767 = vmatpush1.bf16.msra.mxu0 0
        %768 = vmatprep.subr.bf16.mxu0 0
        %769 = vmatpush1.bf16.msra.mxu0 0
        %770 = vmatprep.subr.bf16.mxu0 0
        %771 = vmatpush1.bf16.msra.mxu0 0
        %772 = vmatprep.subr.bf16.mxu0 0
        %773 = vmatpush1.bf16.msra.mxu0 0
        %774 = vmatprep.subr.bf16.mxu0 0
        %775 = vmatpush1.bf16.msra.mxu0 0
        %776 = vmatprep.subr.bf16.mxu0 0
        %777 = vmatpush1.bf16.msra.mxu0 0
        %778 = vmatprep.subr.bf16.mxu0 0
        %779 = vmatpush1.bf16.msra.mxu0 0
        %780 = vmatprep.subr.bf16.mxu0 0
        %781 = vmatpush1.bf16.msra.mxu0 0
        %782 = vmatprep.subr.bf16.mxu0 0
        %783 = vmatpush1.bf16.msra.mxu0 0
        %784 = vmatprep.subr.bf16.mxu0 0
        %785 = vmatpush1.bf16.msra.mxu0 0
        %786 = vmatprep.subr.bf16.mxu0 0
        %787 = vmatpush1.bf16.msra.mxu0 0
        %788 = vmatprep.subr.bf16.mxu0 0
        %789 = vmatpush1.bf16.msra.mxu0 0
        %790 = vmatprep.subr.bf16.mxu0 0
        %791 = vmatpush1.bf16.msra.mxu0 0
        %792 = vmatprep.mubr.bf16.mxu0 0
        %793 = vmatmul.mubr.bf16.gmra.mrb[0].mxu0 %v755
        %v794 = vpop.f32.mrb[0].mxu0
        %v795 = vadd.f32 0.0, %v794
        %v796 = vpop.f32.mrb[0].mxu0
        %v797 = vpop.f32.mrb[0].mxu0
        %v798 = vpop.f32.mrb[0].mxu0
        %799 = vdwg.mxu0
        %v800 = vrcp.pop %v750
        %v801 = vmul.f32 %v795, %v800
        %v802 = vpack.c.bf16 %v801, %v801
        %v804 = vunpack.c.l.b16 %v802
        %v805 = vpack.c.b16 %v804, %v804
        %806 = vrot.lane.b32.xlu0 %v805, 24
        %v807 = vpop.permute.xlu0 %806
        %vm809 = vcmask 257216
        %810 = vst.msk [vmem:[#allocation3] sm:$0xf] %vm809, %v807
        %v811 = vld [vmem:[#allocation3] sm:$0xf]
        %v812 = vld [vmem:[#allocation9] sm:$0xf]
        %v813 = vld [vmem:[#allocation9 + $0x4] sm:$0xf]
        %v814 = vld [vmem:[#allocation9 + $0x8] sm:$0xf]
        %v815 = vld [vmem:[#allocation9 + $0xc] sm:$0xf]
        %v820 = vunpack.c.l.b16 %v812
        %v821 = vunpack.c.l.b16 %v813
        %v822 = vunpack.c.l.b16 %v814
        %v823 = vunpack.c.l.b16 %v815
        %v824 = vpack.c.b16 %v821, %v820
        %v825 = vpack.c.b16 %v823, %v822
        %vm828 = vcmask 261120
        %v830 = vsel %vm828, %v811, 0
        %832 = vmatprep.subr.bf16.mxu0 0
        %833 = vmatpush1.bf16.msra.mxu0 %v824
        %834 = vmatprep.subr.bf16.mxu0 0
        %835 = vmatpush1.bf16.msra.mxu0 %v825
        %836 = vmatprep.subr.bf16.mxu0 0
        %837 = vmatpush1.bf16.msra.mxu0 0
        %838 = vmatprep.subr.bf16.mxu0 0
        %839 = vmatpush1.bf16.msra.mxu0 0
        %840 = vmatprep.subr.bf16.mxu0 0
        %841 = vmatpush1.bf16.msra.mxu0 0
        %842 = vmatprep.subr.bf16.mxu0 0
        %843 = vmatpush1.bf16.msra.mxu0 0
        %844 = vmatprep.subr.bf16.mxu0 0
        %845 = vmatpush1.bf16.msra.mxu0 0
        %846 = vmatprep.subr.bf16.mxu0 0
        %847 = vmatpush1.bf16.msra.mxu0 0
        %848 = vmatprep.subr.bf16.mxu0 0
        %849 = vmatpush1.bf16.msra.mxu0 0
        %850 = vmatprep.subr.bf16.mxu0 0
        %851 = vmatpush1.bf16.msra.mxu0 0
        %852 = vmatprep.subr.bf16.mxu0 0
        %853 = vmatpush1.bf16.msra.mxu0 0
        %854 = vmatprep.subr.bf16.mxu0 0
        %855 = vmatpush1.bf16.msra.mxu0 0
        %856 = vmatprep.subr.bf16.mxu0 0
        %857 = vmatpush1.bf16.msra.mxu0 0
        %858 = vmatprep.subr.bf16.mxu0 0
        %859 = vmatpush1.bf16.msra.mxu0 0
        %860 = vmatprep.subr.bf16.mxu0 0
        %861 = vmatpush1.bf16.msra.mxu0 0
        %862 = vmatprep.subr.bf16.mxu0 0
        %863 = vmatpush1.bf16.msra.mxu0 0
        %864 = vmatprep.mubr.bf16.mxu0 0
        %865 = vmatmul.mubr.bf16.gmra.mrb[0].mxu0 %v830
        %v866 = vpop.f32.mrb[0].mxu0
        %v867 = vadd.f32 0.0, %v866
        %v868 = vpop.f32.mrb[0].mxu0
        %v869 = vpop.f32.mrb[0].mxu0
        %v870 = vpop.f32.mrb[0].mxu0
        %871 = vdwg.mxu0
        %872 = vst.msk [vmem:[%s228] sm:$0xff] %vm828, %v867
        %s873 = sand.u32 %s111, 1
        %s874 = scalar_lea.sflag [#allocation6], %s873
        %s875 = sand.u32 %s111, 1
        %s876 = smul.addr %s875, 8
        %s877 = scalar_lea.vmem [#allocation10], %s876
        // Predicated region
        $region49: #{tpu_custom_call.1} parent=31 // pred_check
          %p878 = pneg %p121
        $region50: #{tpu_custom_call.1} parent=31 // pred_check_branch
          %880 = sbr.rel (%p878) target = $region52
        $region51: #{tpu_custom_call.1} parent=31 // pred_region
          %s882 = ssub.s32 128, 128
          %883 = vsyncadd %s874, %s882
          %s884 = sadd.s32 %s26, %s25
          %s885 = smul.addr %s884, 128
          %s886 = scalar_lea.hbm %s3, %s885
          %s888 = sshll.u32 %s877, 4
          %s889 = int_to_ptr.vmem [resolvable:$true] %s888
          %891 = dma.vmem_to_hbm [thread:$0]  %s889, 128, %s886, %s874
        $region52: #{tpu_custom_call.1} parent=31 // pred_fallthru
          _
      $region32: #{tpu_custom_call.1} parent=5 // pred_fallthru
        _
      %p892 = scmp.le.s32.totalorder 2, %s16
      // Predicated region
      $region53: #{tpu_custom_call.1} parent=5 // pred_check
        %p893 = pneg %p892
      $region54: #{tpu_custom_call.1} parent=5 // pred_check_branch
        %895 = sbr.rel (%p893) target = $region56
      $region55: #{tpu_custom_call.1} parent=5 // pred_region
        %s896 = ssub.s32 %s16, 2
        // Predicated region
        $region57: #{tpu_custom_call.1} parent=55 // pred_check
          %p897 = pneg %p127
        $region58: #{tpu_custom_call.1} parent=55 // pred_check_branch
          %899 = sbr.rel (%p897) target = $region60
        $region59: #{tpu_custom_call.1} parent=55 // pred_region
          %s900 = sand.u32 %s112, 1
          %s901 = scalar_lea.sflag [#allocation6], %s900
          %s902 = sand.u32 %s112, 1
          %s903 = smul.addr %s902, 8
          %s904 = scalar_lea.vmem [#allocation10], %s903
          %905 = dma.done %s901, 128
        $region60: #{tpu_custom_call.1} parent=55 // pred_fallthru
          _
      $region56: #{tpu_custom_call.1} parent=5 // pred_fallthru
        _
    $region6: #{tpu_custom_call.1} parent=1 // loop_footer
      %s20 = sadd.s32 1, %s16
    $region7: #{tpu_custom_call.1} parent=1 // loop_footer_branch
      %15 = sbr.rel target = $region3
    $region8: #{tpu_custom_call.1} parent=1 // loop_exit
      _
    %906 = vsyncpa [#allocation5], 1
    %s907 = scalar_lea.sflag [#allocation5], 1
    %908 = vsyncpa %s907, 1
    %909 = vsyncpa [#allocation8], 1
    %910 = vsyncpa [#allocation6], 1
    %s911 = scalar_lea.sflag [#allocation6], 1
    %912 = vsyncpa %s911, 1

</llo_original>
